<compile_context>
chip_gen: v7x
topology: tpu7x:2x2x1
jax: 0.10.0
libtpu: 0.0.40
codegen_flags: <defaults>
</compile_context>

<pallas_src>
import jax
import jax.numpy as jnp
from jax.experimental import pallas as pl
from jax.experimental.pallas import tpu as pltpu


def permute_kernel(x_ref, o_ref):
    # x_ref: [B, tS, H, D]  (contiguous slab of tS sequence positions, all heads)
    # o_ref: [B, H, tS, D]
    # The (0, 2, 1, 3) permutation happens in VMEM; the minor (lane) dim D is
    # unchanged, so this is a sublane-level relayout hidden under the DMAs.
    o_ref[...] = jnp.transpose(x_ref[...], (0, 2, 1, 3))


def _choose_s_tiling(S):
    # Fewest grid steps wins (per-step overhead ~0.35 us dominates at ~1 MB
    # sizes), but keep the step count even (v7x has 2 TensorCores) and the
    # output block's second-minor dim (tS) a multiple of 8 (sublane tiling).
    for n in (2, 4, 8, 16):
        if S % n == 0 and (S // n) % 8 == 0:
            return S // n, n
    return S, 1  # whole-S single step; block == full dim is always legal


def permute_0213(x):
    # x: [B, S, H, D]  ->  y: [B, H, S, D]
    B, S, H, D = x.shape
    tS, n_steps = _choose_s_tiling(S)
    return pl.pallas_call(
        permute_kernel,
        out_shape=jax.ShapeDtypeStruct((B, H, S, D), x.dtype),
        grid_spec=pltpu.PrefetchScalarGridSpec(
            num_scalar_prefetch=0,
            grid=(n_steps,),
            # Contiguous input read: all heads for tS sequence positions.
            in_specs=[pl.BlockSpec((B, tS, H, D), lambda s: (0, s, 0, 0))],
            # Output: same positions for all heads — H contiguous tS*D chunks.
            out_specs=pl.BlockSpec((B, H, tS, D), lambda s: (0, 0, s, 0)),
        ),
        compiler_params=pltpu.CompilerParams(
            dimension_semantics=("parallel",)),
        # Pure memory traffic: read + write the whole tensor exactly once.
        cost_estimate=pl.CostEstimate(
            flops=0, transcendentals=0,
            bytes_accessed=2 * B * S * H * D * x.dtype.itemsize),
    )(x)


if __name__ == "__main__":
    key = jax.random.PRNGKey(0)

    # Small shape consistent with the module's [B, S, H, D] layout.
    B, S, H, D = 1, 32, 4, 64
    x_small = jax.random.normal(key, (B, S, H, D), dtype=jnp.float32)
    y_small = permute_0213(x_small)
    jax.block_until_ready(y_small)
    assert y_small.shape == (B, H, S, D)
    assert bool(jnp.allclose(y_small, jnp.transpose(x_small, (0, 2, 1, 3))))

    # Validate at the module's real shape [1, 384, 12, 64] (~1.2 MB fp32),
    # which runs as a 2-step grid (tS = 192) with fully contiguous input reads.
    x_full = jax.random.normal(jax.random.PRNGKey(0), (1, 384, 12, 64),
                               dtype=jnp.float32)
    y_full = permute_0213(x_full)
    jax.block_until_ready(y_full)
    assert y_full.shape == (1, 12, 384, 64)
    assert bool(jnp.allclose(y_full, jnp.transpose(x_full, (0, 2, 1, 3))))

    print("KERNEL_OK")
</pallas_src>

<mosaic_0001>
module attributes {stable_mosaic.version = 11 : i64} {
  func.func @permute_kernel(%arg0: i32, %arg1: memref<1x16x4x64xf32, #tpu.memory_space<vmem>>, %arg2: memref<1x4x16x64xf32, #tpu.memory_space<vmem>>) attributes {dimension_semantics = [#tpu.dimension_semantics<parallel>], iteration_bounds = array<i64: 2>, scalar_prefetch = 0 : i64, scratch_operands = 0 : i64, tpu.core_type = #tpu.core_type<tc>, window_params = [{transform_indices = @transform_0, window_bounds = array<i64: 1, 16, 4, 64>}, {transform_indices = @transform_1, window_bounds = array<i64: 1, 4, 16, 64>}]} {
    %c0 = arith.constant 0 : index
    %c0_0 = arith.constant 0 : index
    %c0_1 = arith.constant 0 : index
    %c0_2 = arith.constant 0 : index
    %0 = vector.load %arg1[%c0, %c0_0, %c0_1, %c0_2] : memref<1x16x4x64xf32, #tpu.memory_space<vmem>>, vector<1x16x4x64xf32>
    %1 = tpu.transpose %0, [0, 2, 1, 3] : vector<1x16x4x64xf32> -> vector<1x4x16x64xf32>
    %c0_3 = arith.constant 0 : index
    %c0_4 = arith.constant 0 : index
    %c0_5 = arith.constant 0 : index
    %c0_6 = arith.constant 0 : index
    %2 = vector.load %arg2[%c0_3, %c0_4, %c0_5, %c0_6] : memref<1x4x16x64xf32, #tpu.memory_space<vmem>>, vector<1x4x16x64xf32>
    tpu.vector_store %arg2[%c0_3, %c0_4, %c0_5, %c0_6], %1 {strides = array<i32>} : memref<1x4x16x64xf32, #tpu.memory_space<vmem>>, vector<1x4x16x64xf32>,
    return
  }
  func.func @transform_0(%arg0: i32) -> (i32, i32, i32, i32) {
    %c0_i32 = arith.constant 0 : i32
    %c0_i32_0 = arith.constant 0 : i32
    %c0_i32_1 = arith.constant 0 : i32
    %c0_i32_2 = arith.constant 0 : i32
    return %c0_i32, %arg0, %c0_i32_0, %c0_i32_1 : i32, i32, i32, i32
  }
  func.func @transform_1(%arg0: i32) -> (i32, i32, i32, i32) {
    %c0_i32 = arith.constant 0 : i32
    %c0_i32_0 = arith.constant 0 : i32
    %c0_i32_1 = arith.constant 0 : i32
    %c0_i32_2 = arith.constant 0 : i32
    return %c0_i32, %c0_i32_0, %arg0, %c0_i32_1 : i32, i32, i32, i32
  }
}

</mosaic_0001>

<llo_original>
// kernel: tpu_custom_call.1
$region0: #{tpu_custom_call.1}
  #allocation0 [shape = 'u32[]', space=smem, size = 0x4, offset = 0x4, fixed_abs, tag = 'smem constant byte address 0x4 - core index']
  #allocation1 [shape = 'u32[144,128]{1,0:T(1,128)}', space=vmem, size = 0x12000, scoped, tag = 'internal scratch']
  #allocation6 [shape = 's32[]', space=sflag, size = 0x4, offset = 0, fixed_abs, tag = 'sflag constant byte address 0x0 - dummy sync flag']
  %s0 = inlined_call_operand.hbm [shape: f32[1,32,4,64], index: 0, kind: input, shape index: {}]
  %s1 = inlined_call_operand.hbm [shape: f32[1,4,32,64], index: 1, kind: output, shape index: {}]
  %s2 = sld [smem:[#allocation0]]
  $region41: #{tpu_custom_call.1} parent=0
    _
  %s4 = ssub.s32 1, %s2
  %s5 = scalar_select 0, %s4, %s2
  $region1: #{tpu_custom_call.1} parent=0
    #allocation2 [shape = 'u8[65536]{0}', space=vmem, size = 0x10000, scoped, tag = 'input window, operand 0']
    #allocation3 [shape = 's32[2]{0}', space=sflag, size = 0x8, scoped, tag = 'scoped memory for tpu_custom_call.1']
    #allocation4 [shape = 's32[2]{0}', space=sflag, size = 0x8, scoped, tag = 'scoped memory for tpu_custom_call.1']
    #allocation5 [shape = 'u8[65536]{0}', space=vmem, size = 0x10000, scoped, tag = 'output window, operand 0']
    %6 = vsyncpa [#allocation3], 0
    %s7 = scalar_lea.sflag [#allocation3], 1
    %8 = vsyncpa %s7, 0
    %9 = vsyncpa [#allocation4], 0
    %s10 = scalar_lea.sflag [#allocation4], 1
    %11 = vsyncpa %s10, 0
    loop: start=0, step=1, limit=4
    $region2: #{tpu_custom_call.1} parent=1 // loop_pre_header
      _
    $region3: #{tpu_custom_call.1} parent=1 // loop_header
      %s13 = sphi 0, %s17
      %p14 = scmp.ge.s32.totalorder %s13, 4
      %s23 = sphi 0, %s25
      %s26 = sphi 0, %s23
      %s27 = sphi 0, %s26
      %s43 = sphi 0, %s27
      %s49 = sphi 0, %s51
      %s52 = sphi 0, %s49
      %s53 = sphi 0, %s52
      %s69 = sphi 0, %s53
    $region4: #{tpu_custom_call.1} parent=1 // loop_header_branch
      %16 = sbr.rel (%p14) target = $region8
    $region5: #{tpu_custom_call.1} parent=1 // loop_body
      %s18 = ssub.s32 %s13, 1
      %s19 = ssub.s32 %s13, 2
      %s20 = sadd.s32 %s13, 1
      %s21 = ssub.s32 %s13, %s20
      %p22 = scmp.eq.s32.totalorder %s21, 0
      %s24 = sadd.s32 %s23, 1
      %s25 = scalar_select %p22, %s23, %s24
      %p28 = pneg %p22
      %p29 = scmp.eq.s32.totalorder %s13, 1
      %p30 = por %p28, %p29
      %p31 = scmp.ne.s32.totalorder %s23, %s26
      %p32 = scmp.eq.s32.totalorder %s13, 0
      %p33 = por %p31, %p32
      %p34 = scmp.ne.s32.totalorder %s23, %s26
      %p35 = scmp.eq.s32.totalorder %s18, 1
      %p36 = por %p34, %p35
      %p37 = scmp.ne.s32.totalorder %s26, %s27
      %p38 = scmp.eq.s32.totalorder %s18, 0
      %p39 = por %p37, %p38
      %p40 = scmp.ne.s32.totalorder %s26, %s27
      %p41 = scmp.eq.s32.totalorder %s19, 1
      %p42 = por %p40, %p41
      %p44 = scmp.ne.s32.totalorder %s27, %s43
      %p45 = scmp.eq.s32.totalorder %s19, 0
      %p46 = por %p44, %p45
      %s47 = ssub.s32 %s13, %s20
      %p48 = scmp.eq.s32.totalorder %s47, 0
      %s50 = sadd.s32 %s49, 1
      %s51 = scalar_select %p48, %s49, %s50
      %p54 = pneg %p48
      %p55 = scmp.eq.s32.totalorder %s13, 1
      %p56 = por %p54, %p55
      %p57 = scmp.ne.s32.totalorder %s49, %s52
      %p58 = scmp.eq.s32.totalorder %s13, 0
      %p59 = por %p57, %p58
      %p60 = scmp.ne.s32.totalorder %s49, %s52
      %p61 = scmp.eq.s32.totalorder %s18, 1
      %p62 = por %p60, %p61
      %p63 = scmp.ne.s32.totalorder %s52, %s53
      %p64 = scmp.eq.s32.totalorder %s18, 0
      %p65 = por %p63, %p64
      %p66 = scmp.ne.s32.totalorder %s52, %s53
      %p67 = scmp.eq.s32.totalorder %s19, 1
      %p68 = por %p66, %p67
      %p70 = scmp.ne.s32.totalorder %s53, %s69
      %p71 = scmp.eq.s32.totalorder %s19, 0
      %p72 = por %p70, %p71
      %p73 = scmp.le.s32.totalorder 1, %s13
      %p74 = scmp.lt.s32.totalorder %s13, 3
      %p75 = pnand %p73, %p74
      %p76 = pneg %p75
      // Predicated region
      $region9: #{tpu_custom_call.1} parent=5 // pred_check
        _
      $region10: #{tpu_custom_call.1} parent=5 // pred_check_branch
        %78 = sbr.rel (%p75) target = $region12
      $region11: #{tpu_custom_call.1} parent=5 // pred_region
        %s79 = ssub.s32 %s13, 1
      $region12: #{tpu_custom_call.1} parent=5 // pred_fallthru
        _
      %p80 = scmp.lt.s32.totalorder %s13, 2
      // Predicated region
      $region13: #{tpu_custom_call.1} parent=5 // pred_check
        %p81 = pneg %p80
      $region14: #{tpu_custom_call.1} parent=5 // pred_check_branch
        %83 = sbr.rel (%p81) target = $region16
      $region15: #{tpu_custom_call.1} parent=5 // pred_region
        // Predicated region
        $region17: #{tpu_custom_call.1} parent=15 // pred_check
          %p84 = pneg %p33
        $region18: #{tpu_custom_call.1} parent=15 // pred_check_branch
          %86 = sbr.rel (%p84) target = $region20
        $region19: #{tpu_custom_call.1} parent=15 // pred_region
          %s87 = sand.u32 %s23, 1
          %s88 = scalar_lea.sflag [#allocation3], %s87
          %s89 = sand.u32 %s23, 1
          %s90 = smul.addr %s89, 64
          %s91 = scalar_lea.vmem [#allocation2], %s90
          %s92 = smul.u32 16, %s13
          %s94 = ssub.s32 1024, 1024
          %95 = vsyncadd %s88, %s94
          %s96 = smul.addr %s92, 64
          %s97 = scalar_lea.hbm %s0, %s96
          %s98 = sshll.u32 %s91, 4
          %s99 = int_to_ptr.vmem [resolvable:$true] %s98
          %104 = dma.hbm_to_vmem [thread:$0]  %s97, 1024, %s99, %s88, 64, 64, 4
        $region20: #{tpu_custom_call.1} parent=15 // pred_fallthru
          _
      $region16: #{tpu_custom_call.1} parent=5 // pred_fallthru
        _
      %p105 = scmp.le.s32.totalorder 1, %s13
      %p106 = scmp.lt.s32.totalorder %s13, 3
      %p107 = pnand %p105, %p106
      %p108 = pneg %p107
      // Predicated region
      $region21: #{tpu_custom_call.1} parent=5 // pred_check
        _
      $region22: #{tpu_custom_call.1} parent=5 // pred_check_branch
        %110 = sbr.rel (%p107) target = $region24
      $region23: #{tpu_custom_call.1} parent=5 // pred_region
        %s111 = ssub.s32 %s13, 1
        %s112 = sand.u32 %s26, 1
        %s113 = scalar_lea.sflag [#allocation3], %s112
        %s114 = sand.u32 %s26, 1
        %s115 = smul.addr %s114, 64
        %s116 = scalar_lea.vmem [#allocation2], %s115
        // Predicated region
        $region25: #{tpu_custom_call.1} parent=23 // pred_check
          %p117 = pneg %p39
        $region26: #{tpu_custom_call.1} parent=23 // pred_check_branch
          %119 = sbr.rel (%p117) target = $region28
        $region27: #{tpu_custom_call.1} parent=23 // pred_region
          %120 = dma.done %s113, 1024
        $region28: #{tpu_custom_call.1} parent=23 // pred_fallthru
          _
        %s121 = sand.u32 %s26, 1
        %s122 = scalar_lea.sflag [#allocation3], %s121
        %s123 = sand.u32 %s26, 1
        %s124 = smul.addr %s123, 64
        %s125 = scalar_lea.vmem [#allocation2], %s124
        %p126 = pneg %p39
        %p127 = pneg %p36
        %p128 = pneg %p65
        %p129 = pneg %p62
        %s130 = sand.u32 %s52, 1
        %s131 = scalar_lea.sflag [#allocation4], %s130
        %s132 = sand.u32 %s52, 1
        %s133 = smul.addr %s132, 64
        %s134 = scalar_lea.vmem [#allocation5], %s133
        %s135 = smul.u32 16, %s18
        %s136 = smul.u32 2, %s18
        %v137 = vld [vmem:[%s116] sm:$0xf]
        %v138 = vld [vmem:[%s116 + $0x4] sm:$0xf]
        %v139 = vld [vmem:[%s116 + $0x8] sm:$0xf]
        %v140 = vld [vmem:[%s116 + $0xc] sm:$0xf]
        %v141 = vld [vmem:[%s116 + $0x10] sm:$0xf]
        %v142 = vld [vmem:[%s116 + $0x14] sm:$0xf]
        %v143 = vld [vmem:[%s116 + $0x18] sm:$0xf]
        %v144 = vld [vmem:[%s116 + $0x1c] sm:$0xf]
        %v145 = vld [vmem:[%s116 + $0x20] sm:$0xf]
        %v146 = vld [vmem:[%s116 + $0x24] sm:$0xf]
        %v147 = vld [vmem:[%s116 + $0x28] sm:$0xf]
        %v148 = vld [vmem:[%s116 + $0x2c] sm:$0xf]
        %v149 = vld [vmem:[%s116 + $0x30] sm:$0xf]
        %v150 = vld [vmem:[%s116 + $0x34] sm:$0xf]
        %v151 = vld [vmem:[%s116 + $0x38] sm:$0xf]
        %v152 = vld [vmem:[%s116 + $0x3c] sm:$0xf]
        %v153 = vcombine.low %v137, %v139
        %v155 = vunpack.c.l.s4 1983009808
        %v156 = vunpack.c.0.s8 %v155
        %v157 = vlaneseq
        %v158 = vshrl.u32 %v157, 7
        %v159 = vsub.s32 %v156, %v158
        %v160 = vrot.slane %v153, %v159
        %v161 = vcombine.low %v138, %v140
        %v163 = vunpack.c.l.s4 1983009808
        %v164 = vunpack.c.0.s8 %v163
        %v165 = vlaneseq
        %v166 = vshrl.u32 %v165, 7
        %v167 = vsub.s32 %v164, %v166
        %v168 = vrot.slane %v161, %v167
        %v169 = vcombine.low %v141, %v143
        %v171 = vunpack.c.l.s4 1983009808
        %v172 = vunpack.c.0.s8 %v171
        %v173 = vlaneseq
        %v174 = vshrl.u32 %v173, 7
        %v175 = vsub.s32 %v172, %v174
        %v176 = vrot.slane %v169, %v175
        %v177 = vcombine.low %v142, %v144
        %v179 = vunpack.c.l.s4 1983009808
        %v180 = vunpack.c.0.s8 %v179
        %v181 = vlaneseq
        %v182 = vshrl.u32 %v181, 7
        %v183 = vsub.s32 %v180, %v182
        %v184 = vrot.slane %v177, %v183
        %v185 = vcombine.low %v160, %v168
        %v186 = vcombine.high %v160, %v168
        %v188 = vunpack.c.l.s4 1934713408
        %v189 = vunpack.c.0.s8 %v188
        %v190 = vlaneseq
        %v191 = vshrl.u32 %v190, 7
        %v192 = vsub.s32 %v189, %v191
        %v193 = vrot.slane %v185, %v192
        %v195 = vunpack.c.l.s4 1934713408
        %v196 = vunpack.c.0.s8 %v195
        %v197 = vlaneseq
        %v198 = vshrl.u32 %v197, 7
        %v199 = vsub.s32 %v196, %v198
        %v200 = vrot.slane %v186, %v199
        %v201 = vcombine.low %v176, %v184
        %v202 = vcombine.high %v176, %v184
        %v204 = vunpack.c.l.s4 1934713408
        %v205 = vunpack.c.0.s8 %v204
        %v206 = vlaneseq
        %v207 = vshrl.u32 %v206, 7
        %v208 = vsub.s32 %v205, %v207
        %v209 = vrot.slane %v201, %v208
        %v211 = vunpack.c.l.s4 1934713408
        %v212 = vunpack.c.0.s8 %v211
        %v213 = vlaneseq
        %v214 = vshrl.u32 %v213, 7
        %v215 = vsub.s32 %v212, %v214
        %v216 = vrot.slane %v202, %v215
        %v217 = vcombine.low %v193, %v209
        %v218 = vcombine.high %v193, %v209
        %v219 = vcombine.low %v200, %v216
        %v220 = vcombine.high %v200, %v216
        %v221 = vcombine.low %v145, %v147
        %v223 = vunpack.c.l.s4 1983009808
        %v224 = vunpack.c.0.s8 %v223
        %v225 = vlaneseq
        %v226 = vshrl.u32 %v225, 7
        %v227 = vsub.s32 %v224, %v226
        %v228 = vrot.slane %v221, %v227
        %v229 = vcombine.low %v146, %v148
        %v231 = vunpack.c.l.s4 1983009808
        %v232 = vunpack.c.0.s8 %v231
        %v233 = vlaneseq
        %v234 = vshrl.u32 %v233, 7
        %v235 = vsub.s32 %v232, %v234
        %v236 = vrot.slane %v229, %v235
        %v237 = vcombine.low %v149, %v151
        %v239 = vunpack.c.l.s4 1983009808
        %v240 = vunpack.c.0.s8 %v239
        %v241 = vlaneseq
        %v242 = vshrl.u32 %v241, 7
        %v243 = vsub.s32 %v240, %v242
        %v244 = vrot.slane %v237, %v243
        %v245 = vcombine.low %v150, %v152
        %v247 = vunpack.c.l.s4 1983009808
        %v248 = vunpack.c.0.s8 %v247
        %v249 = vlaneseq
        %v250 = vshrl.u32 %v249, 7
        %v251 = vsub.s32 %v248, %v250
        %v252 = vrot.slane %v245, %v251
        %v253 = vcombine.low %v228, %v236
        %v254 = vcombine.high %v228, %v236
        %v256 = vunpack.c.l.s4 1934713408
        %v257 = vunpack.c.0.s8 %v256
        %v258 = vlaneseq
        %v259 = vshrl.u32 %v258, 7
        %v260 = vsub.s32 %v257, %v259
        %v261 = vrot.slane %v253, %v260
        %v263 = vunpack.c.l.s4 1934713408
        %v264 = vunpack.c.0.s8 %v263
        %v265 = vlaneseq
        %v266 = vshrl.u32 %v265, 7
        %v267 = vsub.s32 %v264, %v266
        %v268 = vrot.slane %v254, %v267
        %v269 = vcombine.low %v244, %v252
        %v270 = vcombine.high %v244, %v252
        %v272 = vunpack.c.l.s4 1934713408
        %v273 = vunpack.c.0.s8 %v272
        %v274 = vlaneseq
        %v275 = vshrl.u32 %v274, 7
        %v276 = vsub.s32 %v273, %v275
        %v277 = vrot.slane %v269, %v276
        %v279 = vunpack.c.l.s4 1934713408
        %v280 = vunpack.c.0.s8 %v279
        %v281 = vlaneseq
        %v282 = vshrl.u32 %v281, 7
        %v283 = vsub.s32 %v280, %v282
        %v284 = vrot.slane %v270, %v283
        %v285 = vcombine.low %v261, %v277
        %v286 = vcombine.high %v261, %v277
        %v287 = vcombine.low %v268, %v284
        %v288 = vcombine.high %v268, %v284
        %vm289 = vcmask 523264
        %290 = vst.msk [vmem:[%s134] sm:$0xff] %vm289, %v217
        %291 = vst.msk [vmem:[%s134 + $0x8] sm:$0xff] %vm289, %v285
        %292 = vst.msk [vmem:[%s134 + $0x10] sm:$0xff] %vm289, %v218
        %293 = vst.msk [vmem:[%s134 + $0x18] sm:$0xff] %vm289, %v286
        %294 = vst.msk [vmem:[%s134 + $0x20] sm:$0xff] %vm289, %v219
        %295 = vst.msk [vmem:[%s134 + $0x28] sm:$0xff] %vm289, %v287
        %296 = vst.msk [vmem:[%s134 + $0x30] sm:$0xff] %vm289, %v220
        %297 = vst.msk [vmem:[%s134 + $0x38] sm:$0xff] %vm289, %v288
        %s298 = sand.u32 %s52, 1
        %s299 = scalar_lea.sflag [#allocation4], %s298
        %s300 = sand.u32 %s52, 1
        %s301 = smul.addr %s300, 64
        %s302 = scalar_lea.vmem [#allocation5], %s301
        // Predicated region
        $region29: #{tpu_custom_call.1} parent=23 // pred_check
          %p303 = pneg %p62
        $region30: #{tpu_custom_call.1} parent=23 // pred_check_branch
          %305 = sbr.rel (%p303) target = $region32
        $region31: #{tpu_custom_call.1} parent=23 // pred_region
          #allocation7 [shape = 'u32[6]{0}', space=smem, size = 0x18, scoped, tag = 'DMA stride descriptor']
          %s306 = smul.u32 2, %s18
          %s308 = ssub.s32 1024, 1024
          %309 = vsyncadd %s299, %s308
          %s310 = smul.addr %s306, 128
          %s311 = scalar_lea.hbm %s1, %s310
          %s313 = sshll.u32 1, 14
          %s314 = sxor.u32 4294967295, %s313
          %s317 = sshll.u32 7, 18
          %s318 = sxor.u32 4294967295, %s317
          %s319 = sand.u32 0, %s318
          %s321 = sor.u32 %s319, 0
          %s323 = sshll.u32 3, 24
          %s324 = sxor.u32 4294967295, %s323
          %s325 = sand.u32 %s321, %s324
          %s327 = sor.u32 %s325, 0
          %s328 = sshll.u32 %s302, 4
          %s329 = int_to_ptr.vmem [resolvable:$true] %s328
          %335 = sst [smem:[#allocation7]] 256
          %s336 = scalar_lea.smem [#allocation7], 1
          %337 = sst [smem:[%s336]] 512
          %s338 = scalar_lea.smem [#allocation7], 2
          %339 = sst [smem:[%s338]] 2
          %s340 = scalar_lea.smem [#allocation7], 3
          %341 = sst [smem:[%s340]] 128
          %s342 = scalar_lea.smem [#allocation7], 4
          %343 = sst [smem:[%s342]] 128
          %s344 = scalar_lea.smem [#allocation7], 5
          %345 = sst [smem:[%s344]] 8
          %347 = dma.general %s329, 1024, %s311, %s299, [#allocation6], [#allocation7], %s327, 0
        $region32: #{tpu_custom_call.1} parent=23 // pred_fallthru
          _
      $region24: #{tpu_custom_call.1} parent=5 // pred_fallthru
        _
      %p348 = scmp.le.s32.totalorder 2, %s13
      // Predicated region
      $region33: #{tpu_custom_call.1} parent=5 // pred_check
        %p349 = pneg %p348
      $region34: #{tpu_custom_call.1} parent=5 // pred_check_branch
        %351 = sbr.rel (%p349) target = $region36
      $region35: #{tpu_custom_call.1} parent=5 // pred_region
        %s352 = ssub.s32 %s13, 2
        // Predicated region
        $region37: #{tpu_custom_call.1} parent=35 // pred_check
          %p353 = pneg %p68
        $region38: #{tpu_custom_call.1} parent=35 // pred_check_branch
          %355 = sbr.rel (%p353) target = $region40
        $region39: #{tpu_custom_call.1} parent=35 // pred_region
          %s356 = sand.u32 %s53, 1
          %s357 = scalar_lea.sflag [#allocation4], %s356
          %s358 = sand.u32 %s53, 1
          %s359 = smul.addr %s358, 64
          %s360 = scalar_lea.vmem [#allocation5], %s359
          %361 = dma.done %s357, 1024
        $region40: #{tpu_custom_call.1} parent=35 // pred_fallthru
          _
      $region36: #{tpu_custom_call.1} parent=5 // pred_fallthru
        _
    $region6: #{tpu_custom_call.1} parent=1 // loop_footer
      %s17 = sadd.s32 1, %s13
    $region7: #{tpu_custom_call.1} parent=1 // loop_footer_branch
      %12 = sbr.rel target = $region3
    $region8: #{tpu_custom_call.1} parent=1 // loop_exit
      _
    %362 = vsyncpa [#allocation3], 1
    %s363 = scalar_lea.sflag [#allocation3], 1
    %364 = vsyncpa %s363, 1
    %365 = vsyncpa [#allocation4], 1
    %s366 = scalar_lea.sflag [#allocation4], 1
    %367 = vsyncpa %s366, 1

</llo_original>
